<compile_context>
chip_gen: v7x
topology: tpu7x:2x2x1
jax: 0.10.0
libtpu: 0.0.40
codegen_flags: <defaults>
</compile_context>

<pallas_src>
import functools

import jax
import jax.numpy as jnp
from jax import lax
from jax.experimental import pallas as pl
from jax.experimental.pallas import tpu as pltpu


def _round_up(n, m):
    return (n + m - 1) // m * m


def _mlp_ce_kernel(x_ref, lab_ref, w1_ref, b1_ref, w2_ref, b2_ref, o_ref, *,
                   batch, tm):
    # Cast the activation tile to the weight dtype *in-kernel* so the MXU runs
    # in its fast (bf16) mode while x travels HBM->VMEM untouched (f32).
    x = x_ref[...].astype(w1_ref.dtype)

    # Hidden layer: (tm, D) @ (D, H), f32 accumulate; ReLU in f32 on the VPU.
    h = jnp.dot(x, w1_ref[...], preferred_element_type=jnp.float32)
    h = jnp.maximum(h + b1_ref[...].astype(jnp.float32), 0.0)

    # Logits: (tm, H) @ (H, C), f32 accumulate.
    logits = jnp.dot(h.astype(w2_ref.dtype), w2_ref[...],
                     preferred_element_type=jnp.float32)
    logits = logits + b2_ref[...].astype(jnp.float32)

    # Numerically stable logsumexp per row (f32 EUP/XLU math).
    # Note (v6e): for vocab-sized C the exp + cross-lane reductions can become
    # the binding slot; tile the class axis if profiling shows that.
    m = jnp.max(logits, axis=-1, keepdims=True)
    lse = m + jnp.log(jnp.sum(jnp.exp(logits - m), axis=-1, keepdims=True))

    # logits[i, lab[i]] without a one-hot input: iota-compare + select-sum.
    lab = lab_ref[...]                                             # (tm, 1) int32
    class_idx = lax.broadcasted_iota(jnp.int32, logits.shape, 1)   # (tm, C)
    picked = jnp.sum(jnp.where(class_idx == lab, logits, 0.0),
                     axis=-1, keepdims=True)

    # Mask rows of the ragged trailing tile (select, so garbage/Inf can't leak).
    row = pl.program_id(0) * tm + lax.broadcasted_iota(jnp.int32, (tm, 1), 0)
    loss_rows = jnp.where(row < batch, lse - picked, 0.0)          # (tm, 1)

    # One partial sum per tile, written as a full lane-dense (8, 128) block
    # (unmasked vector stores; wrapper reads element [0, 0] of each tile).
    partial = jnp.sum(loss_rows, axis=0, keepdims=True)            # (1, 1)
    o_ref[0] = jnp.broadcast_to(partial, (8, 128))


def _choose_tile(batch, d, hidden, num_classes, x_itemsize, w_itemsize):
    tm = min(512, _round_up(batch, 8))
    # Keep >=2 grid steps when batch allows, so the "parallel" batch axis can
    # shard across v7x's two TensorCores (costs nothing on v5e/v6e).
    if batch > 16 and pl.cdiv(batch, tm) < 2:
        tm = _round_up(pl.cdiv(batch, 2), 8)

    # Conservative VMEM budget (fits v7x's 64 MiB even with default-buffered
    # residents): 2x x tiles + 2x resident weights/biases + f32 activations.
    budget = 30 * 1024 * 1024

    def footprint(t):
        x_bytes = 2 * t * d * x_itemsize
        w_bytes = 2 * ((d * hidden + hidden * num_classes) * w_itemsize
                       + (hidden + num_classes) * 4)
        act_bytes = 2 * t * (hidden + num_classes) * 4
        return x_bytes + w_bytes + act_bytes

    while tm > 8 and footprint(tm) > budget:
        tm = _round_up(tm // 2, 8)
    return tm


def model_forward(x, z_mv, w1, b1, w2, b2, *, matmul_dtype=jnp.bfloat16):
    """Sum-reduced cross-entropy loss of the 2-layer MLP classifier."""
    batch, d = x.shape
    hidden = w1.shape[1]
    num_classes = w2.shape[1]

    if matmul_dtype is not None:
        # Weights are resident across all grid steps: cast once, outside the
        # hot loop.  x is deliberately NOT cast here (done in-kernel instead).
        w1 = w1.astype(matmul_dtype)
        w2 = w2.astype(matmul_dtype)

    tm = _choose_tile(batch, d, hidden, num_classes,
                      x.dtype.itemsize, w1.dtype.itemsize)
    num_tiles = pl.cdiv(batch, tm)

    labels = z_mv.astype(jnp.int32).reshape(batch, 1)
    b1r = b1.reshape(1, hidden)
    b2r = b2.reshape(1, num_classes)

    kernel = functools.partial(_mlp_ce_kernel, batch=batch, tm=tm)

    def call_kernel(weight_mode):
        wkw = {} if weight_mode is None else {"pipeline_mode": weight_mode}
        return pl.pallas_call(
            kernel,
            out_shape=jax.ShapeDtypeStruct((num_tiles, 8, 128), jnp.float32),
            grid_spec=pltpu.PrefetchScalarGridSpec(
                num_scalar_prefetch=0,
                grid=(num_tiles,),
                in_specs=[
                    pl.BlockSpec((tm, d), lambda i: (i, 0)),         # x tile
                    pl.BlockSpec((tm, 1), lambda i: (i, 0)),         # labels tile
                    pl.BlockSpec((d, hidden), lambda i: (0, 0), **wkw),            # w1
                    pl.BlockSpec((1, hidden), lambda i: (0, 0), **wkw),            # b1
                    pl.BlockSpec((hidden, num_classes), lambda i: (0, 0), **wkw),  # w2
                    pl.BlockSpec((1, num_classes), lambda i: (0, 0), **wkw),       # b2
                ],
                out_specs=pl.BlockSpec((1, 8, 128), lambda i: (i, 0, 0)),
            ),
            compiler_params=pltpu.CompilerParams(
                dimension_semantics=("parallel",),
                # Explicit: above the 32 MiB default scoped limit, below v7x's
                # 64 MiB physical VMEM.
                vmem_limit_bytes=48 * 1024 * 1024,
            ),
        )(x, labels, w1, b1r, w2, b2r)

    try:
        # Resident weights never change block index: single-buffer them
        # (halves their VMEM footprint — matters on v7x's 64 MiB VMEM).
        partials = call_kernel(pl.Buffered(1))
    except Exception:  # pipeline_mode / Buffered(1) unsupported in this build
        partials = call_kernel(None)

    # Per-tile partials summed outside the kernel; keeps the batch grid axis
    # fully parallel across TensorCores.
    return jnp.sum(partials[:, 0, 0])


if __name__ == "__main__":
    B, D, H, C = 8, 32, 32, 8  # batch, in_features, hidden, num_classes

    key = jax.random.PRNGKey(0)
    kx, ky, k1, k2, k3, k4 = jax.random.split(key, 6)

    x = jax.random.normal(kx, (B, D), dtype=jnp.float32)
    z_mv = jax.random.randint(ky, (B,), 0, C, dtype=jnp.int32)

    # Deterministic parameter init (synthetic weights, no checkpoint load).
    w1 = jax.random.normal(k1, (D, H), dtype=jnp.float32) * (1.0 / jnp.sqrt(D))
    b1 = jax.random.normal(k2, (H,), dtype=jnp.float32) * 0.01
    w2 = jax.random.normal(k3, (H, C), dtype=jnp.float32) * (1.0 / jnp.sqrt(H))
    b2 = jax.random.normal(k4, (C,), dtype=jnp.float32) * 0.01

    loss = model_forward(x, z_mv, w1, b1, w2, b2)
    jax.block_until_ready(loss)

    # Pure-JAX reference using the same bf16-input / f32-accumulate math.
    xb, w1b, w2b = (a.astype(jnp.bfloat16) for a in (x, w1, w2))
    h_ref = jnp.maximum(
        jnp.dot(xb, w1b, preferred_element_type=jnp.float32) + b1, 0.0)
    logits_ref = jnp.dot(h_ref.astype(jnp.bfloat16), w2b,
                         preferred_element_type=jnp.float32) + b2
    ref = jnp.sum(jax.nn.logsumexp(logits_ref, axis=-1)
                  - logits_ref[jnp.arange(B), z_mv])
    assert jnp.allclose(loss, ref, rtol=1e-3, atol=1e-3), (loss, ref)

    print("KERNEL_OK")
</pallas_src>

<mosaic_0001>
module attributes {stable_mosaic.version = 11 : i64} {
  func.func @_mlp_ce_kernel(%arg0: i32, %arg1: memref<8x32xf32, #tpu.memory_space<vmem>>, %arg2: memref<8x1xi32, #tpu.memory_space<vmem>>, %arg3: memref<32x32xbf16, #tpu.memory_space<vmem>>, %arg4: memref<1x32xf32, #tpu.memory_space<vmem>>, %arg5: memref<32x8xbf16, #tpu.memory_space<vmem>>, %arg6: memref<1x8xf32, #tpu.memory_space<vmem>>, %arg7: memref<1x8x128xf32, #tpu.memory_space<vmem>>) attributes {dimension_semantics = [#tpu.dimension_semantics<parallel>], iteration_bounds = array<i64: 1>, scalar_prefetch = 0 : i64, scratch_operands = 0 : i64, tpu.core_type = #tpu.core_type<tc>, window_params = [{transform_indices = @transform_0, window_bounds = array<i64: 8, 32>}, {transform_indices = @transform_1, window_bounds = array<i64: 8, 1>}, {pipeline_mode = #tpu.pipeline_mode<synchronous>, transform_indices = @transform_2, window_bounds = array<i64: 32, 32>}, {pipeline_mode = #tpu.pipeline_mode<synchronous>, transform_indices = @transform_3, window_bounds = array<i64: 1, 32>}, {pipeline_mode = #tpu.pipeline_mode<synchronous>, transform_indices = @transform_4, window_bounds = array<i64: 32, 8>}, {pipeline_mode = #tpu.pipeline_mode<synchronous>, transform_indices = @transform_5, window_bounds = array<i64: 1, 8>}, {transform_indices = @transform_6, window_bounds = array<i64: 1, 8, 128>}]} {
    %c0 = arith.constant 0 : index
    %c0_0 = arith.constant 0 : index
    %0 = vector.load %arg1[%c0, %c0_0] : memref<8x32xf32, #tpu.memory_space<vmem>>, vector<8x32xf32>
    %1 = arith.truncf %0 : vector<8x32xf32> to vector<8x32xbf16>
    %c0_1 = arith.constant 0 : index
    %c0_2 = arith.constant 0 : index
    %2 = vector.load %arg3[%c0_1, %c0_2] : memref<32x32xbf16, #tpu.memory_space<vmem>>, vector<32x32xbf16>
    %cst = arith.constant dense<0.000000e+00> : vector<8x32xf32>
    %3 = tpu.matmul %1, %2, %cst {dimension_numbers = #tpu.dot_dimension_numbers<[1], [0], [0], [1], [0, 0, 1, 1], [], []>} : vector<8x32xbf16>, vector<32x32xbf16>, vector<8x32xf32> -> vector<8x32xf32>
    %c0_3 = arith.constant 0 : index
    %c0_4 = arith.constant 0 : index
    %4 = vector.load %arg4[%c0_3, %c0_4] : memref<1x32xf32, #tpu.memory_space<vmem>>, vector<1x32xf32>
    %5 = vector.broadcast %4 : vector<1x32xf32> to vector<8x32xf32>
    %6 = arith.addf %3, %5 : vector<8x32xf32>
    %cst_5 = arith.constant 0.000000e+00 : f32
    %7 = vector.broadcast %cst_5 : f32 to vector<8x32xf32>
    %8 = arith.maximumf %6, %7 : vector<8x32xf32>
    %9 = arith.truncf %8 : vector<8x32xf32> to vector<8x32xbf16>
    %c0_6 = arith.constant 0 : index
    %c0_7 = arith.constant 0 : index
    %10 = vector.load %arg5[%c0_6, %c0_7] : memref<32x8xbf16, #tpu.memory_space<vmem>>, vector<32x8xbf16>
    %cst_8 = arith.constant dense<0.000000e+00> : vector<8x8xf32>
    %11 = tpu.matmul %9, %10, %cst_8 {dimension_numbers = #tpu.dot_dimension_numbers<[1], [0], [0], [1], [0, 0, 1, 1], [], []>} : vector<8x32xbf16>, vector<32x8xbf16>, vector<8x8xf32> -> vector<8x8xf32>
    %c0_9 = arith.constant 0 : index
    %c0_10 = arith.constant 0 : index
    %12 = vector.load %arg6[%c0_9, %c0_10] : memref<1x8xf32, #tpu.memory_space<vmem>>, vector<1x8xf32>
    %13 = vector.broadcast %12 : vector<1x8xf32> to vector<8x8xf32>
    %14 = arith.addf %11, %13 : vector<8x8xf32>
    %cst_11 = arith.constant dense<0xFF800000> : vector<8xf32>
    %15 = vector.multi_reduction <maximumf>, %14, %cst_11 [1] : vector<8x8xf32> to vector<8xf32>
    %16 = vector.shape_cast %15 : vector<8xf32> to vector<8x1xf32>
    %17 = vector.broadcast %16 : vector<8x1xf32> to vector<8x8xf32>
    %18 = arith.subf %14, %17 : vector<8x8xf32>
    %19 = math.exp %18 : vector<8x8xf32>
    %cst_12 = arith.constant dense<0.000000e+00> : vector<8xf32>
    %20 = vector.multi_reduction <add>, %19, %cst_12 [1] : vector<8x8xf32> to vector<8xf32>
    %21 = vector.shape_cast %20 : vector<8xf32> to vector<8x1xf32>
    %22 = math.log %21 : vector<8x1xf32>
    %23 = arith.addf %16, %22 : vector<8x1xf32>
    %c0_13 = arith.constant 0 : index
    %c0_14 = arith.constant 0 : index
    %24 = vector.load %arg2[%c0_13, %c0_14] : memref<8x1xi32, #tpu.memory_space<vmem>>, vector<8x1xi32>
    %25 = tpu.iota {dimensions = array<i32: 1>} : vector<8x8xi32>
    %26 = vector.broadcast %24 : vector<8x1xi32> to vector<8x8xi32>
    %27 = arith.cmpi eq, %25, %26 : vector<8x8xi32>
    %cst_15 = arith.constant 0.000000e+00 : f32
    %28 = vector.broadcast %cst_15 : f32 to vector<8x8xf32>
    %29 = arith.select %27, %14, %28 : vector<8x8xi1>, vector<8x8xf32>
    %cst_16 = arith.constant dense<0.000000e+00> : vector<8xf32>
    %30 = vector.multi_reduction <add>, %29, %cst_16 [1] : vector<8x8xf32> to vector<8xf32>
    %31 = vector.shape_cast %30 : vector<8xf32> to vector<8x1xf32>
    %c8_i32 = arith.constant 8 : i32
    %32 = arith.muli %arg0, %c8_i32 : i32
    %33 = tpu.iota {dimensions = array<i32: 0>} : vector<8x1xi32>
    %34 = vector.broadcast %32 : i32 to vector<8x1xi32>
    %35 = arith.addi %34, %33 : vector<8x1xi32>
    %c8_i32_17 = arith.constant 8 : i32
    %36 = vector.broadcast %c8_i32_17 : i32 to vector<8x1xi32>
    %37 = arith.cmpi slt, %35, %36 : vector<8x1xi32>
    %38 = arith.subf %23, %31 : vector<8x1xf32>
    %cst_18 = arith.constant 0.000000e+00 : f32
    %39 = vector.broadcast %cst_18 : f32 to vector<8x1xf32>
    %40 = arith.select %37, %38, %39 : vector<8x1xi1>, vector<8x1xf32>
    %cst_19 = arith.constant dense<0.000000e+00> : vector<1xf32>
    %41 = vector.multi_reduction <add>, %40, %cst_19 [0] : vector<8x1xf32> to vector<1xf32>
    %42 = vector.shape_cast %41 : vector<1xf32> to vector<1x1xf32>
    %43 = vector.shape_cast %42 : vector<1x1xf32> to vector<1x1xf32>
    %44 = vector.broadcast %43 : vector<1x1xf32> to vector<8x128xf32>
    %c0_20 = arith.constant 0 : index
    %c0_21 = arith.constant 0 : index
    %c0_22 = arith.constant 0 : index
    %45 = vector.load %arg7[%c0_20, %c0_21, %c0_22] : memref<1x8x128xf32, #tpu.memory_space<vmem>>, vector<1x8x128xf32>
    %46 = vector.shape_cast %45 : vector<1x8x128xf32> to vector<8x128xf32>
    %47 = vector.shape_cast %44 : vector<8x128xf32> to vector<1x8x128xf32>
    tpu.vector_store %arg7[%c0_20, %c0_21, %c0_22], %47 {strides = array<i32>} : memref<1x8x128xf32, #tpu.memory_space<vmem>>, vector<1x8x128xf32>,
    return
  }
  func.func @transform_0(%arg0: i32) -> (i32, i32) {
    %c0_i32 = arith.constant 0 : i32
    %c0_i32_0 = arith.constant 0 : i32
    return %arg0, %c0_i32 : i32, i32
  }
  func.func @transform_1(%arg0: i32) -> (i32, i32) {
    %c0_i32 = arith.constant 0 : i32
    %c0_i32_0 = arith.constant 0 : i32
    return %arg0, %c0_i32 : i32, i32
  }
  func.func @transform_2(%arg0: i32) -> (i32, i32) {
    %c0_i32 = arith.constant 0 : i32
    %c0_i32_0 = arith.constant 0 : i32
    %c0_i32_1 = arith.constant 0 : i32
    return %c0_i32, %c0_i32_0 : i32, i32
  }
  func.func @transform_3(%arg0: i32) -> (i32, i32) {
    %c0_i32 = arith.constant 0 : i32
    %c0_i32_0 = arith.constant 0 : i32
    %c0_i32_1 = arith.constant 0 : i32
    return %c0_i32, %c0_i32_0 : i32, i32
  }
  func.func @transform_4(%arg0: i32) -> (i32, i32) {
    %c0_i32 = arith.constant 0 : i32
    %c0_i32_0 = arith.constant 0 : i32
    %c0_i32_1 = arith.constant 0 : i32
    return %c0_i32, %c0_i32_0 : i32, i32
  }
  func.func @transform_5(%arg0: i32) -> (i32, i32) {
    %c0_i32 = arith.constant 0 : i32
    %c0_i32_0 = arith.constant 0 : i32
    %c0_i32_1 = arith.constant 0 : i32
    return %c0_i32, %c0_i32_0 : i32, i32
  }
  func.func @transform_6(%arg0: i32) -> (i32, i32, i32) {
    %c0_i32 = arith.constant 0 : i32
    %c0_i32_0 = arith.constant 0 : i32
    %c0_i32_1 = arith.constant 0 : i32
    return %arg0, %c0_i32, %c0_i32_0 : i32, i32, i32
  }
}

module attributes {stable_mosaic.version = 11 : i64} {
  func.func @_mlp_ce_kernel(%arg0: i32, %arg1: memref<8x32xf32, #tpu.memory_space<vmem>>, %arg2: memref<8x1xi32, #tpu.memory_space<vmem>>, %arg3: memref<32x32xbf16, #tpu.memory_space<vmem>>, %arg4: memref<1x32xf32, #tpu.memory_space<vmem>>, %arg5: memref<32x8xbf16, #tpu.memory_space<vmem>>, %arg6: memref<1x8xf32, #tpu.memory_space<vmem>>, %arg7: memref<1x8x128xf32, #tpu.memory_space<vmem>>) attributes {dimension_semantics = [#tpu.dimension_semantics<parallel>], iteration_bounds = array<i64: 1>, scalar_prefetch = 0 : i64, scratch_operands = 0 : i64, tpu.core_type = #tpu.core_type<tc>, window_params = [{transform_indices = @transform_0, window_bounds = array<i64: 8, 32>}, {transform_indices = @transform_1, window_bounds = array<i64: 8, 1>}, {pipeline_mode = #tpu.pipeline_mode<synchronous>, transform_indices = @transform_2, window_bounds = array<i64: 32, 32>}, {pipeline_mode = #tpu.pipeline_mode<synchronous>, transform_indices = @transform_3, window_bounds = array<i64: 1, 32>}, {pipeline_mode = #tpu.pipeline_mode<synchronous>, transform_indices = @transform_4, window_bounds = array<i64: 32, 8>}, {pipeline_mode = #tpu.pipeline_mode<synchronous>, transform_indices = @transform_5, window_bounds = array<i64: 1, 8>}, {transform_indices = @transform_6, window_bounds = array<i64: 1, 8, 128>}]} {
    %c0 = arith.constant 0 : index
    %c0_0 = arith.constant 0 : index
    %0 = vector.load %arg1[%c0, %c0_0] : memref<8x32xf32, #tpu.memory_space<vmem>>, vector<8x32xf32>
    %1 = arith.truncf %0 : vector<8x32xf32> to vector<8x32xbf16>
    %c0_1 = arith.constant 0 : index
    %c0_2 = arith.constant 0 : index
    %2 = vector.load %arg3[%c0_1, %c0_2] : memref<32x32xbf16, #tpu.memory_space<vmem>>, vector<32x32xbf16>
    %cst = arith.constant dense<0.000000e+00> : vector<8x32xf32>
    %3 = tpu.matmul %1, %2, %cst {dimension_numbers = #tpu.dot_dimension_numbers<[1], [0], [0], [1], [0, 0, 1, 1], [], []>} : vector<8x32xbf16>, vector<32x32xbf16>, vector<8x32xf32> -> vector<8x32xf32>
    %c0_3 = arith.constant 0 : index
    %c0_4 = arith.constant 0 : index
    %4 = vector.load %arg4[%c0_3, %c0_4] : memref<1x32xf32, #tpu.memory_space<vmem>>, vector<1x32xf32>
    %5 = vector.broadcast %4 : vector<1x32xf32> to vector<8x32xf32>
    %6 = arith.addf %3, %5 : vector<8x32xf32>
    %cst_5 = arith.constant 0.000000e+00 : f32
    %7 = vector.broadcast %cst_5 : f32 to vector<8x32xf32>
    %8 = arith.maximumf %6, %7 : vector<8x32xf32>
    %9 = arith.truncf %8 : vector<8x32xf32> to vector<8x32xbf16>
    %c0_6 = arith.constant 0 : index
    %c0_7 = arith.constant 0 : index
    %10 = vector.load %arg5[%c0_6, %c0_7] : memref<32x8xbf16, #tpu.memory_space<vmem>>, vector<32x8xbf16>
    %cst_8 = arith.constant dense<0.000000e+00> : vector<8x8xf32>
    %11 = tpu.matmul %9, %10, %cst_8 {dimension_numbers = #tpu.dot_dimension_numbers<[1], [0], [0], [1], [0, 0, 1, 1], [], []>} : vector<8x32xbf16>, vector<32x8xbf16>, vector<8x8xf32> -> vector<8x8xf32>
    %c0_9 = arith.constant 0 : index
    %c0_10 = arith.constant 0 : index
    %12 = vector.load %arg6[%c0_9, %c0_10] : memref<1x8xf32, #tpu.memory_space<vmem>>, vector<1x8xf32>
    %13 = vector.broadcast %12 : vector<1x8xf32> to vector<8x8xf32>
    %14 = arith.addf %11, %13 : vector<8x8xf32>
    %cst_11 = arith.constant dense<0xFF800000> : vector<8xf32>
    %15 = vector.multi_reduction <maximumf>, %14, %cst_11 [1] : vector<8x8xf32> to vector<8xf32>
    %16 = vector.shape_cast %15 : vector<8xf32> to vector<8x1xf32>
    %17 = vector.broadcast %16 : vector<8x1xf32> to vector<8x8xf32>
    %18 = arith.subf %14, %17 : vector<8x8xf32>
    %19 = math.exp %18 : vector<8x8xf32>
    %cst_12 = arith.constant dense<0.000000e+00> : vector<8xf32>
    %20 = vector.multi_reduction <add>, %19, %cst_12 [1] : vector<8x8xf32> to vector<8xf32>
    %21 = vector.shape_cast %20 : vector<8xf32> to vector<8x1xf32>
    %22 = math.log %21 : vector<8x1xf32>
    %23 = arith.addf %16, %22 : vector<8x1xf32>
    %c0_13 = arith.constant 0 : index
    %c0_14 = arith.constant 0 : index
    %24 = vector.load %arg2[%c0_13, %c0_14] : memref<8x1xi32, #tpu.memory_space<vmem>>, vector<8x1xi32>
    %25 = tpu.iota {dimensions = array<i32: 1>} : vector<8x8xi32>
    %26 = vector.broadcast %24 : vector<8x1xi32> to vector<8x8xi32>
    %27 = arith.cmpi eq, %25, %26 : vector<8x8xi32>
    %cst_15 = arith.constant 0.000000e+00 : f32
    %28 = vector.broadcast %cst_15 : f32 to vector<8x8xf32>
    %29 = arith.select %27, %14, %28 : vector<8x8xi1>, vector<8x8xf32>
    %cst_16 = arith.constant dense<0.000000e+00> : vector<8xf32>
    %30 = vector.multi_reduction <add>, %29, %cst_16 [1] : vector<8x8xf32> to vector<8xf32>
    %31 = vector.shape_cast %30 : vector<8xf32> to vector<8x1xf32>
    %c8_i32 = arith.constant 8 : i32
    %32 = arith.muli %arg0, %c8_i32 : i32
    %33 = tpu.iota {dimensions = array<i32: 0>} : vector<8x1xi32>
    %34 = vector.broadcast %32 : i32 to vector<8x1xi32>
    %35 = arith.addi %34, %33 : vector<8x1xi32>
    %c8_i32_17 = arith.constant 8 : i32
    %36 = vector.broadcast %c8_i32_17 : i32 to vector<8x1xi32>
    %37 = arith.cmpi slt, %35, %36 : vector<8x1xi32>
    %38 = arith.subf %23, %31 : vector<8x1xf32>
    %cst_18 = arith.constant 0.000000e+00 : f32
    %39 = vector.broadcast %cst_18 : f32 to vector<8x1xf32>
    %40 = arith.select %37, %38, %39 : vector<8x1xi1>, vector<8x1xf32>
    %cst_19 = arith.constant dense<0.000000e+00> : vector<1xf32>
    %41 = vector.multi_reduction <add>, %40, %cst_19 [0] : vector<8x1xf32> to vector<1xf32>
    %42 = vector.shape_cast %41 : vector<1xf32> to vector<1x1xf32>
    %43 = vector.shape_cast %42 : vector<1x1xf32> to vector<1x1xf32>
    %44 = vector.broadcast %43 : vector<1x1xf32> to vector<8x128xf32>
    %c0_20 = arith.constant 0 : index
    %c0_21 = arith.constant 0 : index
    %c0_22 = arith.constant 0 : index
    %45 = vector.load %arg7[%c0_20, %c0_21, %c0_22] : memref<1x8x128xf32, #tpu.memory_space<vmem>>, vector<1x8x128xf32>
    %46 = vector.shape_cast %45 : vector<1x8x128xf32> to vector<8x128xf32>
    %47 = vector.shape_cast %44 : vector<8x128xf32> to vector<1x8x128xf32>
    tpu.vector_store %arg7[%c0_20, %c0_21, %c0_22], %47 {strides = array<i32>} : memref<1x8x128xf32, #tpu.memory_space<vmem>>, vector<1x8x128xf32>,
    return
  }
  func.func @transform_0(%arg0: i32) -> (i32, i32) {
    %c0_i32 = arith.constant 0 : i32
    %c0_i32_0 = arith.constant 0 : i32
    return %arg0, %c0_i32 : i32, i32
  }
  func.func @transform_1(%arg0: i32) -> (i32, i32) {
    %c0_i32 = arith.constant 0 : i32
    %c0_i32_0 = arith.constant 0 : i32
    return %arg0, %c0_i32 : i32, i32
  }
  func.func @transform_2(%arg0: i32) -> (i32, i32) {
    %c0_i32 = arith.constant 0 : i32
    %c0_i32_0 = arith.constant 0 : i32
    %c0_i32_1 = arith.constant 0 : i32
    return %c0_i32, %c0_i32_0 : i32, i32
  }
  func.func @transform_3(%arg0: i32) -> (i32, i32) {
    %c0_i32 = arith.constant 0 : i32
    %c0_i32_0 = arith.constant 0 : i32
    %c0_i32_1 = arith.constant 0 : i32
    return %c0_i32, %c0_i32_0 : i32, i32
  }
  func.func @transform_4(%arg0: i32) -> (i32, i32) {
    %c0_i32 = arith.constant 0 : i32
    %c0_i32_0 = arith.constant 0 : i32
    %c0_i32_1 = arith.constant 0 : i32
    return %c0_i32, %c0_i32_0 : i32, i32
  }
  func.func @transform_5(%arg0: i32) -> (i32, i32) {
    %c0_i32 = arith.constant 0 : i32
    %c0_i32_0 = arith.constant 0 : i32
    %c0_i32_1 = arith.constant 0 : i32
    return %c0_i32, %c0_i32_0 : i32, i32
  }
  func.func @transform_6(%arg0: i32) -> (i32, i32, i32) {
    %c0_i32 = arith.constant 0 : i32
    %c0_i32_0 = arith.constant 0 : i32
    %c0_i32_1 = arith.constant 0 : i32
    return %arg0, %c0_i32, %c0_i32_0 : i32, i32, i32
  }
}

</mosaic_0001>

<llo_original>
// kernel: tpu_custom_call.1
$region0: #{tpu_custom_call.1}
  #allocation0 [shape = 'u32[]', space=smem, size = 0x4, offset = 0x4, fixed_abs, tag = 'smem constant byte address 0x4 - core index']
  #allocation1 [shape = 'u32[144,128]{1,0:T(1,128)}', space=vmem, size = 0x12000, scoped, tag = 'internal scratch']
  %s0 = inlined_call_operand.vmem [shape: f32[8,32], index: 0, kind: input, shape index: {}]
  %s1 = inlined_call_operand.vmem [shape: s32[8,1], index: 1, kind: input, shape index: {}]
  %s2 = inlined_call_operand.vmem [shape: bf16[32,32], index: 2, kind: input, shape index: {}]
  %s3 = inlined_call_operand.vmem [shape: f32[1,32], index: 3, kind: input, shape index: {}]
  %s4 = inlined_call_operand.vmem [shape: bf16[32,8], index: 4, kind: input, shape index: {}]
  %s5 = inlined_call_operand.vmem [shape: f32[1,8], index: 5, kind: input, shape index: {}]
  %s6 = inlined_call_operand.hbm [shape: f32[1,8,128], index: 6, kind: output, shape index: {}]
  %s7 = sld [smem:[#allocation0]]
  $region34: #{tpu_custom_call.1} parent=0
    _
  %s9 = ssub.s32 1, %s7
  %s10 = scalar_select 0, %s9, %s7
  $region1: #{tpu_custom_call.1} parent=0
    #allocation2 [shape = 'u8[4096]{0}', space=vmem, size = 0x1000, scoped, tag = 'output window, operand 0, single buffered']
    #allocation3 [shape = 's32[1]{0}', space=sflag, size = 0x4, scoped, tag = 'scoped memory for tpu_custom_call.1']
    %11 = vsyncpa [#allocation3], 0
    // Predicated region
    $region2: #{tpu_custom_call.1} parent=1 // pred_check
      _
    $region3: #{tpu_custom_call.1} parent=1 // pred_check_branch
      %13 = sbr.rel (0) target = $region5
    $region4: #{tpu_custom_call.1} parent=1 // pred_region
      _
    $region5: #{tpu_custom_call.1} parent=1 // pred_fallthru
      _
    // Predicated region
    $region6: #{tpu_custom_call.1} parent=1 // pred_check
      _
    $region7: #{tpu_custom_call.1} parent=1 // pred_check_branch
      %15 = sbr.rel (0) target = $region9
    $region8: #{tpu_custom_call.1} parent=1 // pred_region
      _
    $region9: #{tpu_custom_call.1} parent=1 // pred_fallthru
      _
    // Predicated region
    $region10: #{tpu_custom_call.1} parent=1 // pred_check
      _
    $region11: #{tpu_custom_call.1} parent=1 // pred_check_branch
      %17 = sbr.rel (0) target = $region13
    $region12: #{tpu_custom_call.1} parent=1 // pred_region
      _
    $region13: #{tpu_custom_call.1} parent=1 // pred_fallthru
      _
    // Predicated region
    $region14: #{tpu_custom_call.1} parent=1 // pred_check
      _
    $region15: #{tpu_custom_call.1} parent=1 // pred_check_branch
      %19 = sbr.rel (0) target = $region17
    $region16: #{tpu_custom_call.1} parent=1 // pred_region
      _
    $region17: #{tpu_custom_call.1} parent=1 // pred_fallthru
      _
    // Predicated region
    $region18: #{tpu_custom_call.1} parent=1 // pred_check
      _
    $region19: #{tpu_custom_call.1} parent=1 // pred_check_branch
      %21 = sbr.rel (0) target = $region21
    $region20: #{tpu_custom_call.1} parent=1 // pred_region
      _
    $region21: #{tpu_custom_call.1} parent=1 // pred_fallthru
      _
    // Predicated region
    $region22: #{tpu_custom_call.1} parent=1 // pred_check
      _
    $region23: #{tpu_custom_call.1} parent=1 // pred_check_branch
      %23 = sbr.rel (0) target = $region25
    $region24: #{tpu_custom_call.1} parent=1 // pred_region
      _
    $region25: #{tpu_custom_call.1} parent=1 // pred_fallthru
      _
    %v25 = vld [vmem:[%s0] sm:$0xff]
    %v26 = vpack.c.bf16 %v25, %v25
    %v27 = vld [vmem:[%s2] sm:$0xf]
    %v28 = vld [vmem:[%s2 + $0x4] sm:$0xf]
    %v29 = vld [vmem:[%s2 + $0x8] sm:$0xf]
    %v30 = vld [vmem:[%s2 + $0xc] sm:$0xf]
    %v31 = vld [vmem:[%s3] sm:$0x1]
    %v33 = vlaneseq
    %v34 = vshrl.u32 %v33, 7
    %v35 = vsub.s32 0, %v34
    %v36 = vrot.slane %v31, %v35
    %v42 = vunpack.c.l.b16 %v27
    %v43 = vunpack.c.l.b16 %v28
    %v44 = vunpack.c.l.b16 %v29
    %v45 = vunpack.c.l.b16 %v30
    %v46 = vpack.c.b16 %v43, %v42
    %v47 = vpack.c.b16 %v45, %v44
    %vm50 = vcmask 261120
    %v52 = vsel %vm50, %v26, 0
    %54 = vmatprep.subr.bf16.mxu0 0
    %55 = vmatpush1.bf16.msra.mxu0 %v46
    %56 = vmatprep.subr.bf16.mxu0 0
    %57 = vmatpush1.bf16.msra.mxu0 %v47
    %58 = vmatprep.subr.bf16.mxu0 0
    %59 = vmatpush1.bf16.msra.mxu0 0
    %60 = vmatprep.subr.bf16.mxu0 0
    %61 = vmatpush1.bf16.msra.mxu0 0
    %62 = vmatprep.subr.bf16.mxu0 0
    %63 = vmatpush1.bf16.msra.mxu0 0
    %64 = vmatprep.subr.bf16.mxu0 0
    %65 = vmatpush1.bf16.msra.mxu0 0
    %66 = vmatprep.subr.bf16.mxu0 0
    %67 = vmatpush1.bf16.msra.mxu0 0
    %68 = vmatprep.subr.bf16.mxu0 0
    %69 = vmatpush1.bf16.msra.mxu0 0
    %70 = vmatprep.subr.bf16.mxu0 0
    %71 = vmatpush1.bf16.msra.mxu0 0
    %72 = vmatprep.subr.bf16.mxu0 0
    %73 = vmatpush1.bf16.msra.mxu0 0
    %74 = vmatprep.subr.bf16.mxu0 0
    %75 = vmatpush1.bf16.msra.mxu0 0
    %76 = vmatprep.subr.bf16.mxu0 0
    %77 = vmatpush1.bf16.msra.mxu0 0
    %78 = vmatprep.subr.bf16.mxu0 0
    %79 = vmatpush1.bf16.msra.mxu0 0
    %80 = vmatprep.subr.bf16.mxu0 0
    %81 = vmatpush1.bf16.msra.mxu0 0
    %82 = vmatprep.subr.bf16.mxu0 0
    %83 = vmatpush1.bf16.msra.mxu0 0
    %84 = vmatprep.subr.bf16.mxu0 0
    %85 = vmatpush1.bf16.msra.mxu0 0
    %86 = vmatprep.mubr.bf16.mxu0 0
    %87 = vmatmul.mubr.bf16.gmra.mrb[0].mxu0 %v52
    %v88 = vpop.f32.mrb[0].mxu0
    %v89 = vadd.f32 %v36, %v88
    %v90 = vpop.f32.mrb[0].mxu0
    %v91 = vpop.f32.mrb[0].mxu0
    %v92 = vpop.f32.mrb[0].mxu0
    %93 = vdwg.mxu0
    %v94 = vmax.f32 %v89, 0.0
    %v95 = vpack.c.bf16 %v94, %v94
    %v96 = vld [vmem:[%s4] sm:$0xf]
    %v97 = vld [vmem:[%s4 + $0x4] sm:$0xf]
    %v98 = vld [vmem:[%s4 + $0x8] sm:$0xf]
    %v99 = vld [vmem:[%s4 + $0xc] sm:$0xf]
    %v100 = vld [vmem:[%s5] sm:$0x1]
    %v102 = vlaneseq
    %v103 = vshrl.u32 %v102, 7
    %v104 = vsub.s32 0, %v103
    %v105 = vrot.slane %v100, %v104
    %v111 = vunpack.c.l.b16 %v96
    %v112 = vunpack.c.l.b16 %v97
    %v113 = vunpack.c.l.b16 %v98
    %v114 = vunpack.c.l.b16 %v99
    %v115 = vpack.c.b16 %v112, %v111
    %v116 = vpack.c.b16 %v114, %v113
    %v120 = vsel %vm50, %v95, 0
    %122 = vmatprep.subr.bf16.mxu0 0
    %123 = vmatpush1.bf16.msra.mxu0 %v115
    %124 = vmatprep.subr.bf16.mxu0 0
    %125 = vmatpush1.bf16.msra.mxu0 %v116
    %126 = vmatprep.subr.bf16.mxu0 0
    %127 = vmatpush1.bf16.msra.mxu0 0
    %128 = vmatprep.subr.bf16.mxu0 0
    %129 = vmatpush1.bf16.msra.mxu0 0
    %130 = vmatprep.subr.bf16.mxu0 0
    %131 = vmatpush1.bf16.msra.mxu0 0
    %132 = vmatprep.subr.bf16.mxu0 0
    %133 = vmatpush1.bf16.msra.mxu0 0
    %134 = vmatprep.subr.bf16.mxu0 0
    %135 = vmatpush1.bf16.msra.mxu0 0
    %136 = vmatprep.subr.bf16.mxu0 0
    %137 = vmatpush1.bf16.msra.mxu0 0
    %138 = vmatprep.subr.bf16.mxu0 0
    %139 = vmatpush1.bf16.msra.mxu0 0
    %140 = vmatprep.subr.bf16.mxu0 0
    %141 = vmatpush1.bf16.msra.mxu0 0
    %142 = vmatprep.subr.bf16.mxu0 0
    %143 = vmatpush1.bf16.msra.mxu0 0
    %144 = vmatprep.subr.bf16.mxu0 0
    %145 = vmatpush1.bf16.msra.mxu0 0
    %146 = vmatprep.subr.bf16.mxu0 0
    %147 = vmatpush1.bf16.msra.mxu0 0
    %148 = vmatprep.subr.bf16.mxu0 0
    %149 = vmatpush1.bf16.msra.mxu0 0
    %150 = vmatprep.subr.bf16.mxu0 0
    %151 = vmatpush1.bf16.msra.mxu0 0
    %152 = vmatprep.subr.bf16.mxu0 0
    %153 = vmatpush1.bf16.msra.mxu0 0
    %154 = vmatprep.mubr.bf16.mxu0 0
    %155 = vmatmul.mubr.bf16.gmra.mrb[0].mxu0 %v120
    %v156 = vpop.f32.mrb[0].mxu0
    %v157 = vadd.f32 %v105, %v156
    %v158 = vpop.f32.mrb[0].mxu0
    %v159 = vpop.f32.mrb[0].mxu0
    %v160 = vpop.f32.mrb[0].mxu0
    %161 = vdwg.mxu0
    %vm162 = vcmask 64512
    %v163 = vsel %vm162, %v157, -inf
    %164 = vmax.xlane.f32.xlu0 %v163
    %v165 = vpop.xlane.xlu0 %164
    %v166 = vsub.f32 %v157, %v165
    %v167 = vmul.f32 %v166, 1.442695
    %v168 = vpow.pop %v167
    %v169 = vsel %vm162, %v168, 0.0
    %170 = vadd.xlane.f32.xlu0 %v169
    %v171 = vpop.xlane.xlu0 %170
    %v172 = vlog2.pop %v171
    %v173 = vmul.f32 %v172, 0.6931472
    %v174 = vadd.f32 %v165, %v173
    %v175 = vld [vmem:[%s1] sm:$0xff]
    %v176 = vlaneseq
    %v177 = vand.u32 %v176, 127
    %178 = vset.pattern.permute.xlu0 0
    %179 = vperm.xlu0 %178, %v175
    %v180 = vpop.permute.xlu0 %179
    %vm181 = vcmp.eq.s32.totalorder %v177, %v180
    %v182 = vsel %vm181, %v157, 0.0
    %v183 = vsel %vm162, %v182, 0.0
    %184 = vadd.xlane.f32.xlu0 %v183
    %v185 = vpop.xlane.xlu0 %184
    %s186 = smul.u32 0, 8
    %v187 = vlaneseq
    %v188 = vshrl.u32 %v187, 7
    %v189 = vstv %s186
    %v190 = vadd.s32 %v189, %v188
    %vm191 = vcmp.lt.s32.totalorder %v190, 8
    %v192 = vsub.f32 %v174, %v185
    %v193 = vsel %vm191, %v192, 0.0
    %v194 = vrot.slane %v193, 4
    %v195 = vadd.f32 %v193, %v194
    %v196 = vrot.slane %v195, 2
    %v197 = vadd.f32 %v195, %v196
    %v198 = vrot.slane %v197, 1
    %v199 = vadd.f32 %v197, %v198
    %200 = vst [vmem:[#allocation2] sm:$0xff] %v199
    // Predicated region
    $region26: #{tpu_custom_call.1} parent=1 // pred_check
      _
    $region27: #{tpu_custom_call.1} parent=1 // pred_check_branch
      %202 = sbr.rel (0) target = $region29
    $region28: #{tpu_custom_call.1} parent=1 // pred_region
      %s204 = ssub.s32 128, 128
      %205 = vsyncadd [#allocation3], %s204
      %s207 = sshll.u32 [#allocation2], 4
      %s208 = int_to_ptr.vmem [resolvable:$true] %s207
      %210 = dma.vmem_to_hbm [thread:$0]  %s208, 128, %s6, [#allocation3]
    $region29: #{tpu_custom_call.1} parent=1 // pred_fallthru
      _
    // Predicated region
    $region30: #{tpu_custom_call.1} parent=1 // pred_check
      _
    $region31: #{tpu_custom_call.1} parent=1 // pred_check_branch
      %212 = sbr.rel (0) target = $region33
    $region32: #{tpu_custom_call.1} parent=1 // pred_region
      %213 = dma.done [#allocation3], 128
    $region33: #{tpu_custom_call.1} parent=1 // pred_fallthru
      _
    %214 = vsyncpa [#allocation3], 1

// kernel: tpu_custom_call.1
$region0: #{tpu_custom_call.1}
  #allocation0 [shape = 'u32[]', space=smem, size = 0x4, offset = 0x4, fixed_abs, tag = 'smem constant byte address 0x4 - core index']
  #allocation1 [shape = 'u32[144,128]{1,0:T(1,128)}', space=vmem, size = 0x12000, scoped, tag = 'internal scratch']
  %s0 = inlined_call_operand.vmem [shape: f32[8,32], index: 0, kind: input, shape index: {}]
  %s1 = inlined_call_operand.vmem [shape: s32[8,1], index: 1, kind: input, shape index: {}]
  %s2 = inlined_call_operand.vmem [shape: bf16[32,32], index: 2, kind: input, shape index: {}]
  %s3 = inlined_call_operand.vmem [shape: f32[1,32], index: 3, kind: input, shape index: {}]
  %s4 = inlined_call_operand.vmem [shape: bf16[32,8], index: 4, kind: input, shape index: {}]
  %s5 = inlined_call_operand.vmem [shape: f32[1,8], index: 5, kind: input, shape index: {}]
  %s6 = inlined_call_operand.hbm [shape: f32[1,8,128], index: 6, kind: output, shape index: {}]
  %s7 = sld [smem:[#allocation0]]
  $region34: #{tpu_custom_call.1} parent=0
    _
  %s9 = ssub.s32 1, %s7
  %s10 = scalar_select 0, %s9, %s7
  $region1: #{tpu_custom_call.1} parent=0
    #allocation2 [shape = 'u8[4096]{0}', space=vmem, size = 0x1000, scoped, tag = 'output window, operand 0, single buffered']
    #allocation3 [shape = 's32[1]{0}', space=sflag, size = 0x4, scoped, tag = 'scoped memory for tpu_custom_call.1']
    %11 = vsyncpa [#allocation3], 0
    // Predicated region
    $region2: #{tpu_custom_call.1} parent=1 // pred_check
      _
    $region3: #{tpu_custom_call.1} parent=1 // pred_check_branch
      %13 = sbr.rel (0) target = $region5
    $region4: #{tpu_custom_call.1} parent=1 // pred_region
      _
    $region5: #{tpu_custom_call.1} parent=1 // pred_fallthru
      _
    // Predicated region
    $region6: #{tpu_custom_call.1} parent=1 // pred_check
      _
    $region7: #{tpu_custom_call.1} parent=1 // pred_check_branch
      %15 = sbr.rel (0) target = $region9
    $region8: #{tpu_custom_call.1} parent=1 // pred_region
      _
    $region9: #{tpu_custom_call.1} parent=1 // pred_fallthru
      _
    // Predicated region
    $region10: #{tpu_custom_call.1} parent=1 // pred_check
      _
    $region11: #{tpu_custom_call.1} parent=1 // pred_check_branch
      %17 = sbr.rel (0) target = $region13
    $region12: #{tpu_custom_call.1} parent=1 // pred_region
      _
    $region13: #{tpu_custom_call.1} parent=1 // pred_fallthru
      _
    // Predicated region
    $region14: #{tpu_custom_call.1} parent=1 // pred_check
      _
    $region15: #{tpu_custom_call.1} parent=1 // pred_check_branch
      %19 = sbr.rel (0) target = $region17
    $region16: #{tpu_custom_call.1} parent=1 // pred_region
      _
    $region17: #{tpu_custom_call.1} parent=1 // pred_fallthru
      _
    // Predicated region
    $region18: #{tpu_custom_call.1} parent=1 // pred_check
      _
    $region19: #{tpu_custom_call.1} parent=1 // pred_check_branch
      %21 = sbr.rel (0) target = $region21
    $region20: #{tpu_custom_call.1} parent=1 // pred_region
      _
    $region21: #{tpu_custom_call.1} parent=1 // pred_fallthru
      _
    // Predicated region
    $region22: #{tpu_custom_call.1} parent=1 // pred_check
      _
    $region23: #{tpu_custom_call.1} parent=1 // pred_check_branch
      %23 = sbr.rel (0) target = $region25
    $region24: #{tpu_custom_call.1} parent=1 // pred_region
      _
    $region25: #{tpu_custom_call.1} parent=1 // pred_fallthru
      _
    %v25 = vld [vmem:[%s0] sm:$0xff]
    %v26 = vpack.c.bf16 %v25, %v25
    %v27 = vld [vmem:[%s2] sm:$0xf]
    %v28 = vld [vmem:[%s2 + $0x4] sm:$0xf]
    %v29 = vld [vmem:[%s2 + $0x8] sm:$0xf]
    %v30 = vld [vmem:[%s2 + $0xc] sm:$0xf]
    %v31 = vld [vmem:[%s3] sm:$0x1]
    %v33 = vlaneseq
    %v34 = vshrl.u32 %v33, 7
    %v35 = vsub.s32 0, %v34
    %v36 = vrot.slane %v31, %v35
    %v42 = vunpack.c.l.b16 %v27
    %v43 = vunpack.c.l.b16 %v28
    %v44 = vunpack.c.l.b16 %v29
    %v45 = vunpack.c.l.b16 %v30
    %v46 = vpack.c.b16 %v43, %v42
    %v47 = vpack.c.b16 %v45, %v44
    %vm50 = vcmask 261120
    %v52 = vsel %vm50, %v26, 0
    %54 = vmatprep.subr.bf16.mxu0 0
    %55 = vmatpush1.bf16.msra.mxu0 %v46
    %56 = vmatprep.subr.bf16.mxu0 0
    %57 = vmatpush1.bf16.msra.mxu0 %v47
    %58 = vmatprep.subr.bf16.mxu0 0
    %59 = vmatpush1.bf16.msra.mxu0 0
    %60 = vmatprep.subr.bf16.mxu0 0
    %61 = vmatpush1.bf16.msra.mxu0 0
    %62 = vmatprep.subr.bf16.mxu0 0
    %63 = vmatpush1.bf16.msra.mxu0 0
    %64 = vmatprep.subr.bf16.mxu0 0
    %65 = vmatpush1.bf16.msra.mxu0 0
    %66 = vmatprep.subr.bf16.mxu0 0
    %67 = vmatpush1.bf16.msra.mxu0 0
    %68 = vmatprep.subr.bf16.mxu0 0
    %69 = vmatpush1.bf16.msra.mxu0 0
    %70 = vmatprep.subr.bf16.mxu0 0
    %71 = vmatpush1.bf16.msra.mxu0 0
    %72 = vmatprep.subr.bf16.mxu0 0
    %73 = vmatpush1.bf16.msra.mxu0 0
    %74 = vmatprep.subr.bf16.mxu0 0
    %75 = vmatpush1.bf16.msra.mxu0 0
    %76 = vmatprep.subr.bf16.mxu0 0
    %77 = vmatpush1.bf16.msra.mxu0 0
    %78 = vmatprep.subr.bf16.mxu0 0
    %79 = vmatpush1.bf16.msra.mxu0 0
    %80 = vmatprep.subr.bf16.mxu0 0
    %81 = vmatpush1.bf16.msra.mxu0 0
    %82 = vmatprep.subr.bf16.mxu0 0
    %83 = vmatpush1.bf16.msra.mxu0 0
    %84 = vmatprep.subr.bf16.mxu0 0
    %85 = vmatpush1.bf16.msra.mxu0 0
    %86 = vmatprep.mubr.bf16.mxu0 0
    %87 = vmatmul.mubr.bf16.gmra.mrb[0].mxu0 %v52
    %v88 = vpop.f32.mrb[0].mxu0
    %v89 = vadd.f32 %v36, %v88
    %v90 = vpop.f32.mrb[0].mxu0
    %v91 = vpop.f32.mrb[0].mxu0
    %v92 = vpop.f32.mrb[0].mxu0
    %93 = vdwg.mxu0
    %v94 = vmax.f32 %v89, 0.0
    %v95 = vpack.c.bf16 %v94, %v94
    %v96 = vld [vmem:[%s4] sm:$0xf]
    %v97 = vld [vmem:[%s4 + $0x4] sm:$0xf]
    %v98 = vld [vmem:[%s4 + $0x8] sm:$0xf]
    %v99 = vld [vmem:[%s4 + $0xc] sm:$0xf]
    %v100 = vld [vmem:[%s5] sm:$0x1]
    %v102 = vlaneseq
    %v103 = vshrl.u32 %v102, 7
    %v104 = vsub.s32 0, %v103
    %v105 = vrot.slane %v100, %v104
    %v111 = vunpack.c.l.b16 %v96
    %v112 = vunpack.c.l.b16 %v97
    %v113 = vunpack.c.l.b16 %v98
    %v114 = vunpack.c.l.b16 %v99
    %v115 = vpack.c.b16 %v112, %v111
    %v116 = vpack.c.b16 %v114, %v113
    %v120 = vsel %vm50, %v95, 0
    %122 = vmatprep.subr.bf16.mxu0 0
    %123 = vmatpush1.bf16.msra.mxu0 %v115
    %124 = vmatprep.subr.bf16.mxu0 0
    %125 = vmatpush1.bf16.msra.mxu0 %v116
    %126 = vmatprep.subr.bf16.mxu0 0
    %127 = vmatpush1.bf16.msra.mxu0 0
    %128 = vmatprep.subr.bf16.mxu0 0
    %129 = vmatpush1.bf16.msra.mxu0 0
    %130 = vmatprep.subr.bf16.mxu0 0
    %131 = vmatpush1.bf16.msra.mxu0 0
    %132 = vmatprep.subr.bf16.mxu0 0
    %133 = vmatpush1.bf16.msra.mxu0 0
    %134 = vmatprep.subr.bf16.mxu0 0
    %135 = vmatpush1.bf16.msra.mxu0 0
    %136 = vmatprep.subr.bf16.mxu0 0
    %137 = vmatpush1.bf16.msra.mxu0 0
    %138 = vmatprep.subr.bf16.mxu0 0
    %139 = vmatpush1.bf16.msra.mxu0 0
    %140 = vmatprep.subr.bf16.mxu0 0
    %141 = vmatpush1.bf16.msra.mxu0 0
    %142 = vmatprep.subr.bf16.mxu0 0
    %143 = vmatpush1.bf16.msra.mxu0 0
    %144 = vmatprep.subr.bf16.mxu0 0
    %145 = vmatpush1.bf16.msra.mxu0 0
    %146 = vmatprep.subr.bf16.mxu0 0
    %147 = vmatpush1.bf16.msra.mxu0 0
    %148 = vmatprep.subr.bf16.mxu0 0
    %149 = vmatpush1.bf16.msra.mxu0 0
    %150 = vmatprep.subr.bf16.mxu0 0
    %151 = vmatpush1.bf16.msra.mxu0 0
    %152 = vmatprep.subr.bf16.mxu0 0
    %153 = vmatpush1.bf16.msra.mxu0 0
    %154 = vmatprep.mubr.bf16.mxu0 0
    %155 = vmatmul.mubr.bf16.gmra.mrb[0].mxu0 %v120
    %v156 = vpop.f32.mrb[0].mxu0
    %v157 = vadd.f32 %v105, %v156
    %v158 = vpop.f32.mrb[0].mxu0
    %v159 = vpop.f32.mrb[0].mxu0
    %v160 = vpop.f32.mrb[0].mxu0
    %161 = vdwg.mxu0
    %vm162 = vcmask 64512
    %v163 = vsel %vm162, %v157, -inf
    %164 = vmax.xlane.f32.xlu0 %v163
    %v165 = vpop.xlane.xlu0 %164
    %v166 = vsub.f32 %v157, %v165
    %v167 = vmul.f32 %v166, 1.442695
    %v168 = vpow.pop %v167
    %v169 = vsel %vm162, %v168, 0.0
    %170 = vadd.xlane.f32.xlu0 %v169
    %v171 = vpop.xlane.xlu0 %170
    %v172 = vlog2.pop %v171
    %v173 = vmul.f32 %v172, 0.6931472
    %v174 = vadd.f32 %v165, %v173
    %v175 = vld [vmem:[%s1] sm:$0xff]
    %v176 = vlaneseq
    %v177 = vand.u32 %v176, 127
    %178 = vset.pattern.permute.xlu0 0
    %179 = vperm.xlu0 %178, %v175
    %v180 = vpop.permute.xlu0 %179
    %vm181 = vcmp.eq.s32.totalorder %v177, %v180
    %v182 = vsel %vm181, %v157, 0.0
    %v183 = vsel %vm162, %v182, 0.0
    %184 = vadd.xlane.f32.xlu0 %v183
    %v185 = vpop.xlane.xlu0 %184
    %s186 = smul.u32 0, 8
    %v187 = vlaneseq
    %v188 = vshrl.u32 %v187, 7
    %v189 = vstv %s186
    %v190 = vadd.s32 %v189, %v188
    %vm191 = vcmp.lt.s32.totalorder %v190, 8
    %v192 = vsub.f32 %v174, %v185
    %v193 = vsel %vm191, %v192, 0.0
    %v194 = vrot.slane %v193, 4
    %v195 = vadd.f32 %v193, %v194
    %v196 = vrot.slane %v195, 2
    %v197 = vadd.f32 %v195, %v196
    %v198 = vrot.slane %v197, 1
    %v199 = vadd.f32 %v197, %v198
    %200 = vst [vmem:[#allocation2] sm:$0xff] %v199
    // Predicated region
    $region26: #{tpu_custom_call.1} parent=1 // pred_check
      _
    $region27: #{tpu_custom_call.1} parent=1 // pred_check_branch
      %202 = sbr.rel (0) target = $region29
    $region28: #{tpu_custom_call.1} parent=1 // pred_region
      %s204 = ssub.s32 128, 128
      %205 = vsyncadd [#allocation3], %s204
      %s207 = sshll.u32 [#allocation2], 4
      %s208 = int_to_ptr.vmem [resolvable:$true] %s207
      %210 = dma.vmem_to_hbm [thread:$0]  %s208, 128, %s6, [#allocation3]
    $region29: #{tpu_custom_call.1} parent=1 // pred_fallthru
      _
    // Predicated region
    $region30: #{tpu_custom_call.1} parent=1 // pred_check
      _
    $region31: #{tpu_custom_call.1} parent=1 // pred_check_branch
      %212 = sbr.rel (0) target = $region33
    $region32: #{tpu_custom_call.1} parent=1 // pred_region
      %213 = dma.done [#allocation3], 128
    $region33: #{tpu_custom_call.1} parent=1 // pred_fallthru
      _
    %214 = vsyncpa [#allocation3], 1

</llo_original>
